<compile_context>
chip_gen: v5e
topology: v5e:2x2
jax: 0.10.0
libtpu: 0.0.40
codegen_flags: <defaults>
</compile_context>

<pallas_src>
import jax
import jax.numpy as jnp
from jax.experimental import pallas as pl
from jax.experimental.pallas import tpu as pltpu

# Max lanes per tile (multiple of 128). A (3, TB) f32 input tile pads sublanes
# 3 -> 8, so one input buffer is 8*TB*4 B = 1 MiB at TB = 32768; with double
# buffering plus the (1, TB) output buffers the working set is ~2.5 MiB, well
# under the scoped-VMEM defaults on v5e / v6e / v7x (64 MiB physical on v7x).
_MAX_TB = 32768


def _make_lca_kernel(inp, gamma, alpha, beta, dt_tau):
    """Build the kernel body with constants folded at trace time."""
    c_inp = float(inp) * float(dt_tau)
    c_pos = (float(alpha) - float(gamma)) * float(dt_tau)   # x1 > 0 branch
    c_neg = -float(gamma) * float(dt_tau)                   # x1 <= 0 branch
    c_beta = float(beta) * float(dt_tau)

    def lca_kernel(x_ref, o_ref):
        x1 = x_ref[0:1, :]            # (1, TB) f32, lane-dense
        x2 = x_ref[1:2, :]
        x3 = x_ref[2:3, :]
        # (inp - gamma*x1 + alpha*relu(x1) - beta*(relu(x2)+relu(x3))) * dt_tau
        # with dt_tau pre-folded and the x1 terms fused into one mul + select.
        d_x1 = (c_inp
                + x1 * jnp.where(x1 > 0.0, c_pos, c_neg)
                - c_beta * (jnp.maximum(x2, 0.0) + jnp.maximum(x3, 0.0)))
        o_ref[...] = d_x1

    return lca_kernel


def lca_forward_t(x3b, *, inp=0.0, gamma=0.4, alpha=0.2, beta=0.2,
                  dt_tau=1.0, block_b=_MAX_TB):
    """LCA forward on a pre-transposed, lane-dense (3, B) f32 input.

    Returns d_x1 with shape (B, 1), matching the PyTorch module's output.
    """
    x3b = jnp.asarray(x3b, dtype=jnp.float32)
    assert x3b.ndim == 2 and x3b.shape[0] == 3, x3b.shape
    b = x3b.shape[1]

    # Lane-dense tile over B: multiple of 128, capped at block_b.
    tb = min(int(block_b), pl.cdiv(b, 128) * 128)
    tb = max(tb, 128)
    b_pad = pl.cdiv(b, tb) * tb
    if b_pad != b:
        x3b = jnp.pad(x3b, ((0, 0), (0, b_pad - b)))

    kernel = _make_lca_kernel(inp, gamma, alpha, beta, dt_tau)

    out = pl.pallas_call(
        kernel,
        out_shape=jax.ShapeDtypeStruct((1, b_pad), jnp.float32),
        grid=(b_pad // tb,),
        in_specs=[pl.BlockSpec((3, tb), lambda i: (0, i))],
        out_specs=pl.BlockSpec((1, tb), lambda i: (0, i)),
        compiler_params=pltpu.CompilerParams(
            dimension_semantics=("parallel",),   # shards tiles across TCs on v7x
            vmem_limit_bytes=32 << 20,
        ),
    )(x3b)

    # (1, B) lane-dense kernel output -> (B, 1) to match the module semantics.
    return out[:, :b].reshape(b, 1)


def lca_forward(x, *, inp=0.0, gamma=0.4, alpha=0.2, beta=0.2, dt_tau=1.0,
                block_b=_MAX_TB):
    """JAX/Pallas equivalent of LCA_Model.forward (module layout (B, >=3))."""
    x = jnp.asarray(x, dtype=jnp.float32)
    if x.ndim <= 1:
        x = x.reshape(1, -1)
    assert x.shape[1] >= 3, f"LCA_Model needs >= 3 columns, got shape {x.shape}"
    # One transpose + slice here presents the kernel with a lane-dense (3, B)
    # layout. Callers that already hold (3, B) data should call lca_forward_t
    # directly and skip this wrapper-side copy.
    x3b = x[:, :3].T
    return lca_forward_t(x3b, inp=inp, gamma=gamma, alpha=alpha, beta=beta,
                         dt_tau=dt_tau, block_b=block_b)


def lca_forward_ref(x, *, inp=0.0, gamma=0.4, alpha=0.2, beta=0.2, dt_tau=1.0):
    """Pure-JAX reference (mirrors the PyTorch code exactly)."""
    x = jnp.asarray(x, dtype=jnp.float32)
    if x.ndim <= 1:
        x = x.reshape(1, -1)
    x1 = x[:, 0:1]
    x2 = x[:, 1:2]
    x3 = x[:, 2:3]
    relu = lambda v: jnp.maximum(v, 0.0)
    return (inp - gamma * x1 + alpha * relu(x1)
            - beta * (relu(x2) + relu(x3))) * dt_tau


if __name__ == "__main__":
    key = jax.random.PRNGKey(0)
    # Small batch of (B, 3) inputs, mixed signs to exercise the relu branches.
    B = 8
    x = jax.random.normal(key, (B, 3), dtype=jnp.float32)

    out = jax.block_until_ready(lca_forward(x))
    ref = lca_forward_ref(x)

    assert out.shape == (B, 1), out.shape
    assert out.dtype == jnp.float32, out.dtype
    assert jnp.allclose(out, ref, atol=1e-6, rtol=1e-6), (out, ref)

    # Also exercise the pre-transposed fast path.
    out_t = jax.block_until_ready(lca_forward_t(x[:, :3].T))
    assert jnp.allclose(out_t, ref, atol=1e-6, rtol=1e-6), (out_t, ref)

    print("KERNEL_OK")
</pallas_src>

<mosaic_0001>
module attributes {stable_mosaic.version = 11 : i64} {
  func.func @lca_kernel(%arg0: i32, %arg1: memref<3x128xf32, #tpu.memory_space<vmem>>, %arg2: memref<1x128xf32, #tpu.memory_space<vmem>>) attributes {dimension_semantics = [#tpu.dimension_semantics<parallel>], iteration_bounds = array<i64: 1>, scalar_prefetch = 0 : i64, scratch_operands = 0 : i64, tpu.core_type = #tpu.core_type<tc>, window_params = [{transform_indices = @transform_0, window_bounds = array<i64: 3, 128>}, {transform_indices = @transform_1, window_bounds = array<i64: 1, 128>}]} {
    %c0 = arith.constant 0 : index
    %c0_0 = arith.constant 0 : index
    %0 = vector.load %arg1[%c0, %c0_0] : memref<3x128xf32, #tpu.memory_space<vmem>>, vector<1x128xf32>
    %c1 = arith.constant 1 : index
    %c0_1 = arith.constant 0 : index
    %1 = vector.load %arg1[%c1, %c0_1] : memref<3x128xf32, #tpu.memory_space<vmem>>, vector<1x128xf32>
    %c2 = arith.constant 2 : index
    %c0_2 = arith.constant 0 : index
    %2 = vector.load %arg1[%c2, %c0_2] : memref<3x128xf32, #tpu.memory_space<vmem>>, vector<1x128xf32>
    %cst = arith.constant 0.000000e+00 : f32
    %3 = vector.broadcast %cst : f32 to vector<1x128xf32>
    %4 = arith.cmpf ogt, %0, %3 : vector<1x128xf32>
    %cst_3 = arith.constant -2.000000e-01 : f32
    %cst_4 = arith.constant -4.000000e-01 : f32
    %5 = vector.broadcast %cst_3 : f32 to vector<1x128xf32>
    %6 = vector.broadcast %cst_4 : f32 to vector<1x128xf32>
    %7 = arith.select %4, %5, %6 : vector<1x128xi1>, vector<1x128xf32>
    %8 = arith.mulf %0, %7 : vector<1x128xf32>
    %cst_5 = arith.constant 0.000000e+00 : f32
    %9 = vector.broadcast %cst_5 : f32 to vector<1x128xf32>
    %10 = arith.addf %9, %8 : vector<1x128xf32>
    %cst_6 = arith.constant 0.000000e+00 : f32
    %11 = vector.broadcast %cst_6 : f32 to vector<1x128xf32>
    %12 = arith.maximumf %1, %11 : vector<1x128xf32>
    %cst_7 = arith.constant 0.000000e+00 : f32
    %13 = vector.broadcast %cst_7 : f32 to vector<1x128xf32>
    %14 = arith.maximumf %2, %13 : vector<1x128xf32>
    %15 = arith.addf %12, %14 : vector<1x128xf32>
    %cst_8 = arith.constant 2.000000e-01 : f32
    %16 = vector.broadcast %cst_8 : f32 to vector<1x128xf32>
    %17 = arith.mulf %16, %15 : vector<1x128xf32>
    %18 = arith.subf %10, %17 : vector<1x128xf32>
    %c0_9 = arith.constant 0 : index
    %c0_10 = arith.constant 0 : index
    %19 = vector.load %arg2[%c0_9, %c0_10] : memref<1x128xf32, #tpu.memory_space<vmem>>, vector<1x128xf32>
    tpu.vector_store %arg2[%c0_9, %c0_10], %18 {strides = array<i32>} : memref<1x128xf32, #tpu.memory_space<vmem>>, vector<1x128xf32>,
    return
  }
  func.func @transform_0(%arg0: i32) -> (i32, i32) {
    %c0_i32 = arith.constant 0 : i32
    %c0_i32_0 = arith.constant 0 : i32
    return %c0_i32, %arg0 : i32, i32
  }
  func.func @transform_1(%arg0: i32) -> (i32, i32) {
    %c0_i32 = arith.constant 0 : i32
    %c0_i32_0 = arith.constant 0 : i32
    return %c0_i32, %arg0 : i32, i32
  }
}

</mosaic_0001>

<llo_original>
// kernel: tpu_custom_call.1
$region0: #{tpu_custom_call.1}
  #allocation0 [shape = 'u32[]', space=smem, size = 0x4, offset = 0x4, fixed_abs, tag = 'smem constant byte address 0x4 - core index']
  #allocation1 [shape = 'u32[72,128]{1,0:T(1,128)}', space=vmem, size = 0x9000, scoped, tag = 'internal scratch']
  %s0 = inlined_call_operand.hbm [shape: f32[3,128], index: 0, kind: input, shape index: {}]
  %s1 = inlined_call_operand.hbm [shape: f32[1,128], index: 1, kind: output, shape index: {}]
  %s2 = sld [smem:[#allocation0]]
  $region18: #{tpu_custom_call.1} parent=0
    _
  %s4 = ssub.s32 1, %s2
  %s5 = scalar_select 0, %s4, %s2
  $region1: #{tpu_custom_call.1} parent=0
    #allocation2 [shape = 'u8[2048]{0}', space=vmem, size = 0x800, scoped, tag = 'input window, operand 0, single buffered']
    #allocation3 [shape = 's32[1]{0}', space=sflag, size = 0x4, scoped, tag = 'scoped memory for tpu_custom_call.1']
    #allocation4 [shape = 's32[1]{0}', space=sflag, size = 0x4, scoped, tag = 'scoped memory for tpu_custom_call.1']
    #allocation5 [shape = 'u8[512]{0}', space=vmem, size = 0x400, scoped, tag = 'output window, operand 0, single buffered']
    %6 = vsyncpa [#allocation3], 0
    %7 = vsyncpa [#allocation4], 0
    // Predicated region
    $region2: #{tpu_custom_call.1} parent=1 // pred_check
      _
    $region3: #{tpu_custom_call.1} parent=1 // pred_check_branch
      %9 = sbr.rel (0) target = $region5
    $region4: #{tpu_custom_call.1} parent=1 // pred_region
      %11 = vsyncadd [#allocation3], 0
      %s13 = sshll.u32 %s0, 4
      %s14 = int_to_ptr.hbm [resolvable:$true] %s13
      %s15 = sshll.u32 [#allocation2], 4
      %s16 = int_to_ptr.vmem [resolvable:$true] %s15
      %18 = dma.hbm_to_vmem [thread:$0]  %s14, 64, %s16, [#allocation3]
    $region5: #{tpu_custom_call.1} parent=1 // pred_fallthru
      _
    // Predicated region
    $region6: #{tpu_custom_call.1} parent=1 // pred_check
      _
    $region7: #{tpu_custom_call.1} parent=1 // pred_check_branch
      %20 = sbr.rel (0) target = $region9
    $region8: #{tpu_custom_call.1} parent=1 // pred_region
      %22 = dma.done [#allocation3], 64
    $region9: #{tpu_custom_call.1} parent=1 // pred_fallthru
      _
    %v23 = vld [vmem:[#allocation2] sm:$0x1]
    %v24 = vld [vmem:[#allocation2 + $0x1] sm:$0x1]
    %v25 = vld [vmem:[#allocation2 + $0x2] sm:$0x1]
    %vm26 = vcmp.gt.f32.partialorder %v23, 0.0
    %v27 = vsel %vm26, -0.2, -0.4
    %v28 = vmul.f32 %v23, %v27
    %v29 = vadd.f32 %v28, 0.0
    %v30 = vmax.f32 %v24, 0.0
    %v31 = vmax.f32 %v25, 0.0
    %v32 = vadd.f32 %v30, %v31
    %v33 = vmul.f32 %v32, 0.2
    %v34 = vsub.f32 %v29, %v33
    %35 = vst [vmem:[#allocation5] sm:$0x1] %v34
    // Predicated region
    $region10: #{tpu_custom_call.1} parent=1 // pred_check
      _
    $region11: #{tpu_custom_call.1} parent=1 // pred_check_branch
      %37 = sbr.rel (0) target = $region13
    $region12: #{tpu_custom_call.1} parent=1 // pred_region
      %39 = vsyncadd [#allocation4], 0
      %s41 = sshll.u32 [#allocation5], 4
      %s42 = int_to_ptr.vmem [resolvable:$true] %s41
      %s43 = sshll.u32 %s1, 4
      %s44 = int_to_ptr.hbm [resolvable:$true] %s43
      %46 = dma.vmem_to_hbm [thread:$0]  %s42, 16, %s44, [#allocation4]
    $region13: #{tpu_custom_call.1} parent=1 // pred_fallthru
      _
    // Predicated region
    $region14: #{tpu_custom_call.1} parent=1 // pred_check
      _
    $region15: #{tpu_custom_call.1} parent=1 // pred_check_branch
      %48 = sbr.rel (0) target = $region17
    $region16: #{tpu_custom_call.1} parent=1 // pred_region
      %50 = dma.done [#allocation4], 16
    $region17: #{tpu_custom_call.1} parent=1 // pred_fallthru
      _
    %51 = vsyncpa [#allocation3], 1
    %52 = vsyncpa [#allocation4], 1

</llo_original>
